<compile_context>
chip_gen: v7x
topology: tpu7x:2x2x1
jax: 0.10.0
libtpu: 0.0.40
codegen_flags: <defaults>
</compile_context>

<pallas_src>
import math
from functools import partial

import jax
import jax.numpy as jnp
from jax.experimental import pallas as pl
from jax.experimental.pallas import tpu as pltpu


# ---------------------------------------------------------------------------
# Pallas kernel
# ---------------------------------------------------------------------------
def _series_decomp_kernel(a_ref, x_ref, res_ref, mean_ref, *, bt):
    # a_ref   : (L, L)        averaging operator (1/K band, edge clamp baked in)
    # x_ref   : (Bt, L, Ct)   raw input block (no padded copy in HBM)
    # res_ref : (Bt, L, Ct)   x - moving_mean
    # mean_ref: (Bt, L, Ct)   moving_mean
    a = a_ref[...]
    for b in range(bt):  # static unroll; each iteration is one MXU matmul
        x = x_ref[b].astype(jnp.float32)                       # (L, Ct)
        mean = jnp.dot(a, x, preferred_element_type=jnp.float32)
        mean_ref[b] = mean.astype(mean_ref.dtype)
        res_ref[b] = (x - mean).astype(res_ref.dtype)


# ---------------------------------------------------------------------------
# Tiling heuristics
# ---------------------------------------------------------------------------
# Conservative working-set budget: fits under v7x's 32 MiB scoped default (and
# 64 MiB physical VMEM) with headroom; v5e/v6e get the same tiles and we raise
# the scoped limit to 32 MiB explicitly below.
_VMEM_BUDGET_BYTES = 22 * 1024 * 1024


def _largest_divisor_leq(n, upper):
    upper = max(1, min(n, int(upper)))
    for d in range(upper, 0, -1):
        if n % d == 0:
            return d
    return 1


def _choose_tiles(B, L, C, itemsize):
    # Lane-dense channel tile: prefer the full C (multiple of 128 for real
    # d_model); a block dim equal to the full array dim also satisfies the
    # (8,128) rule when C is odd-sized.
    if C % 128 == 0:
        c_tile = C
        while c_tile > 1024 and c_tile % 2 == 0:   # keep single-block DMAs sane
            c_tile //= 2
    else:
        c_tile = C

    a_bytes = 2 * L * L * 4                        # double-buffered A
    per_b_block = 3 * L * c_tile * itemsize        # x + res + mean, one batch row
    budget = max(_VMEM_BUDGET_BYTES - a_bytes, 2 * per_b_block)
    bt_cap = max(1, budget // (2 * per_b_block))   # 2x for double buffering
    bt = _largest_divisor_leq(B, bt_cap)

    # v7x megacore: make sure the parallel grid has >= 2 blocks when possible.
    if (B // bt) * (C // c_tile) < 2:
        if B > 1:
            bt = _largest_divisor_leq(B, B // 2)
        elif C % 256 == 0:
            c_tile //= 2
    return bt, c_tile


# ---------------------------------------------------------------------------
# Forward pass wrapper
# ---------------------------------------------------------------------------
def series_decomp_forward(x, *, kernel_size):
    """x: (B, L, C) -> (res, moving_mean), both (B, L, C)."""
    B, L, C = x.shape
    K = int(kernel_size)
    front = K - 1 - (K - 1) // 2
    itemsize = jnp.dtype(x.dtype).itemsize

    # Averaging operator with edge-replicate padding folded in:
    #   mean[i] = (1/K) * sum_{t=0}^{K-1} x[clip(i - front + t, 0, L-1)]
    rows = jnp.arange(L)
    win = jnp.clip(rows[:, None] + jnp.arange(K)[None, :] - front, 0, L - 1)  # (L, K)
    a_mat = (win[:, :, None] == rows[None, None, :]).astype(jnp.float32)
    a_mat = a_mat.sum(axis=1) * (1.0 / K)                                     # (L, L)

    bt, c_tile = _choose_tiles(B, L, C, itemsize)
    grid = (B // bt, C // c_tile)

    kernel = partial(_series_decomp_kernel, bt=bt)
    cost = pl.CostEstimate(
        flops=2 * B * L * L * C + B * L * C,
        transcendentals=0,
        bytes_accessed=3 * B * L * C * itemsize + L * L * 4,
    )

    res, mean = pl.pallas_call(
        kernel,
        out_shape=(
            jax.ShapeDtypeStruct((B, L, C), x.dtype),
            jax.ShapeDtypeStruct((B, L, C), x.dtype),
        ),
        grid=grid,
        in_specs=[
            # Constant block index -> DMA'd once and reused across the grid.
            pl.BlockSpec((L, L), lambda b, c: (0, 0)),
            pl.BlockSpec((bt, L, c_tile), lambda b, c: (b, 0, c)),
        ],
        out_specs=[
            pl.BlockSpec((bt, L, c_tile), lambda b, c: (b, 0, c)),
            pl.BlockSpec((bt, L, c_tile), lambda b, c: (b, 0, c)),
        ],
        compiler_params=pltpu.CompilerParams(
            dimension_semantics=("parallel", "parallel"),
            vmem_limit_bytes=32 * 1024 * 1024,
        ),
        cost_estimate=cost,
    )(a_mat, x)
    return res, mean


# ---------------------------------------------------------------------------
# Pure-JAX reference (mirrors the PyTorch module exactly) for correctness
# ---------------------------------------------------------------------------
def reference_series_decomp(x, kernel_size):
    K = int(kernel_size)
    B, L, C = x.shape
    front = K - 1 - (K - 1) // 2
    end = (K - 1) // 2
    xpad = jnp.concatenate(
        [
            jnp.repeat(x[:, :1, :], front, axis=1),
            x,
            jnp.repeat(x[:, -1:, :], end, axis=1),
        ],
        axis=1,
    )
    windows = jnp.stack([xpad[:, j:j + L, :] for j in range(K)], axis=0)
    mean = jnp.mean(windows, axis=0)
    return x - mean, mean


# ---------------------------------------------------------------------------
if __name__ == "__main__":
    # Lane-dense config (C multiple of 128, like a real d_model).
    B, L, C, K = 2, 16, 128, 7
    x = jax.random.normal(jax.random.PRNGKey(0), (B, L, C), jnp.float32)

    fwd = jax.jit(partial(series_decomp_forward, kernel_size=K))
    res, mean = fwd(x)
    jax.block_until_ready((res, mean))
    assert res.shape == (B, L, C) and mean.shape == (B, L, C)

    res_ref, mean_ref = reference_series_decomp(x, K)
    err = max(
        float(jnp.max(jnp.abs(res - res_ref))),
        float(jnp.max(jnp.abs(mean - mean_ref))),
    )
    assert err < 1e-5, f"mismatch vs reference (C=128 case): {err}"

    # Second config: C not a multiple of 128 and K > L (stresses the clamped
    # averaging operator and the full-C block path).
    B2, L2, C2, K2 = 2, 16, 32, 25
    x2 = jax.random.normal(jax.random.PRNGKey(1), (B2, L2, C2), jnp.float32)
    res2, mean2 = jax.jit(partial(series_decomp_forward, kernel_size=K2))(x2)
    jax.block_until_ready((res2, mean2))
    res2_ref, mean2_ref = reference_series_decomp(x2, K2)
    err2 = max(
        float(jnp.max(jnp.abs(res2 - res2_ref))),
        float(jnp.max(jnp.abs(mean2 - mean2_ref))),
    )
    assert err2 < 1e-5, f"mismatch vs reference (K>L case): {err2}"

    print("KERNEL_OK")
</pallas_src>

<mosaic_0001>
module attributes {stable_mosaic.version = 11 : i64} {
  func.func @_series_decomp_kernel(%arg0: i32, %arg1: i32, %arg2: memref<16x16xf32, #tpu.memory_space<vmem>>, %arg3: memref<1x16x128xf32, #tpu.memory_space<vmem>>, %arg4: memref<1x16x128xf32, #tpu.memory_space<vmem>>, %arg5: memref<1x16x128xf32, #tpu.memory_space<vmem>>) attributes {dimension_semantics = [#tpu.dimension_semantics<parallel>, #tpu.dimension_semantics<parallel>], iteration_bounds = array<i64: 2, 1>, scalar_prefetch = 0 : i64, scratch_operands = 0 : i64, tpu.core_type = #tpu.core_type<tc>, window_params = [{pipeline_mode = #tpu.pipeline_mode<synchronous>, transform_indices = @transform_0, window_bounds = array<i64: 16, 16>}, {transform_indices = @transform_1, window_bounds = array<i64: 1, 16, 128>}, {transform_indices = @transform_2, window_bounds = array<i64: 1, 16, 128>}, {transform_indices = @transform_3, window_bounds = array<i64: 1, 16, 128>}]} {
    %c0 = arith.constant 0 : index
    %c0_0 = arith.constant 0 : index
    %0 = vector.load %arg2[%c0, %c0_0] : memref<16x16xf32, #tpu.memory_space<vmem>>, vector<16x16xf32>
    %c0_1 = arith.constant 0 : index
    %c0_2 = arith.constant 0 : index
    %c0_3 = arith.constant 0 : index
    %1 = vector.load %arg3[%c0_1, %c0_2, %c0_3] : memref<1x16x128xf32, #tpu.memory_space<vmem>>, vector<1x16x128xf32>
    %2 = vector.shape_cast %1 : vector<1x16x128xf32> to vector<16x128xf32>
    %cst = arith.constant dense<0.000000e+00> : vector<16x128xf32>
    %3 = tpu.matmul %0, %2, %cst {dimension_numbers = #tpu.dot_dimension_numbers<[1], [0], [0], [1], [0, 0, 1, 1], [], []>} : vector<16x16xf32>, vector<16x128xf32>, vector<16x128xf32> -> vector<16x128xf32>
    %c0_4 = arith.constant 0 : index
    %c0_5 = arith.constant 0 : index
    %c0_6 = arith.constant 0 : index
    %4 = vector.load %arg5[%c0_4, %c0_5, %c0_6] : memref<1x16x128xf32, #tpu.memory_space<vmem>>, vector<1x16x128xf32>
    %5 = vector.shape_cast %4 : vector<1x16x128xf32> to vector<16x128xf32>
    %6 = vector.shape_cast %3 : vector<16x128xf32> to vector<1x16x128xf32>
    tpu.vector_store %arg5[%c0_4, %c0_5, %c0_6], %6 {strides = array<i32>} : memref<1x16x128xf32, #tpu.memory_space<vmem>>, vector<1x16x128xf32>,
    %7 = arith.subf %2, %3 : vector<16x128xf32>
    %c0_7 = arith.constant 0 : index
    %c0_8 = arith.constant 0 : index
    %c0_9 = arith.constant 0 : index
    %8 = vector.load %arg4[%c0_7, %c0_8, %c0_9] : memref<1x16x128xf32, #tpu.memory_space<vmem>>, vector<1x16x128xf32>
    %9 = vector.shape_cast %8 : vector<1x16x128xf32> to vector<16x128xf32>
    %10 = vector.shape_cast %7 : vector<16x128xf32> to vector<1x16x128xf32>
    tpu.vector_store %arg4[%c0_7, %c0_8, %c0_9], %10 {strides = array<i32>} : memref<1x16x128xf32, #tpu.memory_space<vmem>>, vector<1x16x128xf32>,
    return
  }
  func.func @transform_0(%arg0: i32, %arg1: i32) -> (i32, i32) {
    %c0_i32 = arith.constant 0 : i32
    %c0_i32_0 = arith.constant 0 : i32
    %c0_i32_1 = arith.constant 0 : i32
    return %c0_i32, %c0_i32_0 : i32, i32
  }
  func.func @transform_1(%arg0: i32, %arg1: i32) -> (i32, i32, i32) {
    %c0_i32 = arith.constant 0 : i32
    %c0_i32_0 = arith.constant 0 : i32
    return %arg0, %c0_i32, %arg1 : i32, i32, i32
  }
  func.func @transform_2(%arg0: i32, %arg1: i32) -> (i32, i32, i32) {
    %c0_i32 = arith.constant 0 : i32
    %c0_i32_0 = arith.constant 0 : i32
    return %arg0, %c0_i32, %arg1 : i32, i32, i32
  }
  func.func @transform_3(%arg0: i32, %arg1: i32) -> (i32, i32, i32) {
    %c0_i32 = arith.constant 0 : i32
    %c0_i32_0 = arith.constant 0 : i32
    return %arg0, %c0_i32, %arg1 : i32, i32, i32
  }
}

</mosaic_0001>

<llo_original>
// kernel: series_decomp_forward.1
$region0: #{series_decomp_forward.1}
  #allocation0 [shape = 'u32[]', space=smem, size = 0x4, offset = 0x4, fixed_abs, tag = 'smem constant byte address 0x4 - core index']
  #allocation1 [shape = 'u32[144,128]{1,0:T(1,128)}', space=vmem, size = 0x12000, scoped, tag = 'internal scratch']
  %s0 = inlined_call_operand.vmem [shape: f32[16,16], index: 0, kind: input, shape index: {}]
  %s1 = inlined_call_operand.vmem [shape: f32[2,16,128], index: 1, kind: input, shape index: {}]
  %s2 = inlined_call_operand.hbm [shape: f32[2,16,128], index: 2, kind: output, shape index: {0}]
  %s3 = inlined_call_operand.hbm [shape: f32[2,16,128], index: 3, kind: output, shape index: {1}]
  %4 = xla_tuple %s2, %s3
  %s5 = sld [smem:[#allocation0]]
  $region49: #{series_decomp_forward.1} parent=0
    _
  %s7 = ssub.s32 1, %s5
  %s8 = scalar_select 0, %s7, %s5
  $region1: #{series_decomp_forward.1} parent=0
    #allocation2 [shape = 'u8[16384]{0}', space=vmem, size = 0x4000, scoped, tag = 'output window, operand 0']
    #allocation3 [shape = 's32[2]{0}', space=sflag, size = 0x8, scoped, tag = 'scoped memory for series_decomp_forward.1']
    #allocation4 [shape = 'u8[16384]{0}', space=vmem, size = 0x4000, scoped, tag = 'output window, operand 1']
    #allocation5 [shape = 's32[2]{0}', space=sflag, size = 0x8, scoped, tag = 'scoped memory for series_decomp_forward.1']
    %9 = vsyncpa [#allocation3], 0
    %s10 = scalar_lea.sflag [#allocation3], 1
    %11 = vsyncpa %s10, 0
    %12 = vsyncpa [#allocation5], 0
    %s13 = scalar_lea.sflag [#allocation5], 1
    %14 = vsyncpa %s13, 0
    loop: start=0, step=1, limit=4
    $region2: #{series_decomp_forward.1} parent=1 // loop_pre_header
      _
    $region3: #{series_decomp_forward.1} parent=1 // loop_header
      %s16 = sphi 0, %s20
      %p17 = scmp.ge.s32.totalorder %s16, 4
      %s23 = sphi 0, %s35
      %s24 = sphi 0, %s31
      %s25 = sphi 0, %s23
      %s26 = sphi 0, %s24
      %s27 = sphi 0, %s25
      %s28 = sphi 0, %s26
      %s36 = sphi 0, %s36
      %s38 = sphi 0, %s36
      %s39 = sphi 0, %s38
      %s53 = sphi 0, %s39
      %s61 = sphi 0, %s63
      %s64 = sphi 0, %s61
      %s65 = sphi 0, %s64
      %s81 = sphi 0, %s65
      %s89 = sphi 0, %s91
      %s92 = sphi 0, %s89
      %s93 = sphi 0, %s92
      %s109 = sphi 0, %s93
      %s117 = sphi 0, %s119
      %s120 = sphi 0, %s117
      %s121 = sphi 0, %s120
      %s137 = sphi 0, %s121
    $region4: #{series_decomp_forward.1} parent=1 // loop_header_branch
      %19 = sbr.rel (%p17) target = $region8
    $region5: #{series_decomp_forward.1} parent=1 // loop_body
      %s21 = ssub.s32 %s16, 1
      %s22 = ssub.s32 %s16, 2
      %s29 = sadd.s32 1, %s24
      %p30 = scmp.ge.s32.totalorder %s29, 1
      %s31 = scalar_select %p30, 0, %s29
      %s32 = sadd.s32 1, %s23
      %s33 = scalar_select %p30, %s32, %s23
      %p34 = scmp.ge.s32.totalorder %s33, 2
      %s35 = scalar_select %p34, 0, %s33
      %s37 = sadd.s32 %s36, 1
      %p40 = scmp.eq.s32.totalorder %s16, 1
      %p41 = scmp.ne.s32.totalorder %s36, %s38
      %p42 = scmp.eq.s32.totalorder %s16, 0
      %p43 = por %p41, %p42
      %p44 = scmp.ne.s32.totalorder %s36, %s38
      %p45 = scmp.eq.s32.totalorder %s21, 1
      %p46 = por %p44, %p45
      %p47 = scmp.ne.s32.totalorder %s38, %s39
      %p48 = scmp.eq.s32.totalorder %s21, 0
      %p49 = por %p47, %p48
      %p50 = scmp.ne.s32.totalorder %s38, %s39
      %p51 = scmp.eq.s32.totalorder %s22, 1
      %p52 = por %p50, %p51
      %p54 = scmp.ne.s32.totalorder %s39, %s53
      %p55 = scmp.eq.s32.totalorder %s22, 0
      %p56 = por %p54, %p55
      %s57 = ssub.s32 %s23, %s35
      %s58 = ssub.s32 %s24, %s31
      %s59 = sor.u32 %s57, %s58
      %p60 = scmp.eq.s32.totalorder %s59, 0
      %s62 = sadd.s32 %s61, 1
      %s63 = scalar_select %p60, %s61, %s62
      %p66 = pneg %p60
      %p67 = scmp.eq.s32.totalorder %s16, 1
      %p68 = por %p66, %p67
      %p69 = scmp.ne.s32.totalorder %s61, %s64
      %p70 = scmp.eq.s32.totalorder %s16, 0
      %p71 = por %p69, %p70
      %p72 = scmp.ne.s32.totalorder %s61, %s64
      %p73 = scmp.eq.s32.totalorder %s21, 1
      %p74 = por %p72, %p73
      %p75 = scmp.ne.s32.totalorder %s64, %s65
      %p76 = scmp.eq.s32.totalorder %s21, 0
      %p77 = por %p75, %p76
      %p78 = scmp.ne.s32.totalorder %s64, %s65
      %p79 = scmp.eq.s32.totalorder %s22, 1
      %p80 = por %p78, %p79
      %p82 = scmp.ne.s32.totalorder %s65, %s81
      %p83 = scmp.eq.s32.totalorder %s22, 0
      %p84 = por %p82, %p83
      %s85 = ssub.s32 %s23, %s35
      %s86 = ssub.s32 %s24, %s31
      %s87 = sor.u32 %s85, %s86
      %p88 = scmp.eq.s32.totalorder %s87, 0
      %s90 = sadd.s32 %s89, 1
      %s91 = scalar_select %p88, %s89, %s90
      %p94 = pneg %p88
      %p95 = scmp.eq.s32.totalorder %s16, 1
      %p96 = por %p94, %p95
      %p97 = scmp.ne.s32.totalorder %s89, %s92
      %p98 = scmp.eq.s32.totalorder %s16, 0
      %p99 = por %p97, %p98
      %p100 = scmp.ne.s32.totalorder %s89, %s92
      %p101 = scmp.eq.s32.totalorder %s21, 1
      %p102 = por %p100, %p101
      %p103 = scmp.ne.s32.totalorder %s92, %s93
      %p104 = scmp.eq.s32.totalorder %s21, 0
      %p105 = por %p103, %p104
      %p106 = scmp.ne.s32.totalorder %s92, %s93
      %p107 = scmp.eq.s32.totalorder %s22, 1
      %p108 = por %p106, %p107
      %p110 = scmp.ne.s32.totalorder %s93, %s109
      %p111 = scmp.eq.s32.totalorder %s22, 0
      %p112 = por %p110, %p111
      %s113 = ssub.s32 %s23, %s35
      %s114 = ssub.s32 %s24, %s31
      %s115 = sor.u32 %s113, %s114
      %p116 = scmp.eq.s32.totalorder %s115, 0
      %s118 = sadd.s32 %s117, 1
      %s119 = scalar_select %p116, %s117, %s118
      %p122 = pneg %p116
      %p123 = scmp.eq.s32.totalorder %s16, 1
      %p124 = por %p122, %p123
      %p125 = scmp.ne.s32.totalorder %s117, %s120
      %p126 = scmp.eq.s32.totalorder %s16, 0
      %p127 = por %p125, %p126
      %p128 = scmp.ne.s32.totalorder %s117, %s120
      %p129 = scmp.eq.s32.totalorder %s21, 1
      %p130 = por %p128, %p129
      %p131 = scmp.ne.s32.totalorder %s120, %s121
      %p132 = scmp.eq.s32.totalorder %s21, 0
      %p133 = por %p131, %p132
      %p134 = scmp.ne.s32.totalorder %s120, %s121
      %p135 = scmp.eq.s32.totalorder %s22, 1
      %p136 = por %p134, %p135
      %p138 = scmp.ne.s32.totalorder %s121, %s137
      %p139 = scmp.eq.s32.totalorder %s22, 0
      %p140 = por %p138, %p139
      %p141 = scmp.le.s32.totalorder 1, %s16
      %p142 = scmp.lt.s32.totalorder %s16, 3
      %p143 = pnand %p141, %p142
      %p144 = pneg %p143
      // Predicated region
      $region9: #{series_decomp_forward.1} parent=5 // pred_check
        _
      $region10: #{series_decomp_forward.1} parent=5 // pred_check_branch
        %146 = sbr.rel (%p143) target = $region12
      $region11: #{series_decomp_forward.1} parent=5 // pred_region
        %s147 = ssub.s32 %s16, 1
        // Predicated region
        $region13: #{series_decomp_forward.1} parent=11 // pred_check
          %p148 = pneg %p49
        $region14: #{series_decomp_forward.1} parent=11 // pred_check_branch
          %150 = sbr.rel (%p148) target = $region16
        $region15: #{series_decomp_forward.1} parent=11 // pred_region
          _
        $region16: #{series_decomp_forward.1} parent=11 // pred_fallthru
          _
      $region12: #{series_decomp_forward.1} parent=5 // pred_fallthru
        _
      %p151 = scmp.lt.s32.totalorder %s16, 2
      // Predicated region
      $region17: #{series_decomp_forward.1} parent=5 // pred_check
        %p152 = pneg %p151
      $region18: #{series_decomp_forward.1} parent=5 // pred_check_branch
        %154 = sbr.rel (%p152) target = $region20
      $region19: #{series_decomp_forward.1} parent=5 // pred_region
        // Predicated region
        $region21: #{series_decomp_forward.1} parent=19 // pred_check
          %p155 = pneg %p71
        $region22: #{series_decomp_forward.1} parent=19 // pred_check_branch
          %157 = sbr.rel (%p155) target = $region24
        $region23: #{series_decomp_forward.1} parent=19 // pred_region
          %p158 = scmp.lt.s32.totalorder %s23, 1
          %s159 = scalar_select %p158, %s23, 1
          %p160 = scmp.lt.s32.totalorder %s24, 0
          %s161 = scalar_select %p160, %s24, 0
          %s162 = smul.addr %s159, 2
          %s163 = sadd.s32 %s161, %s162
          %s164 = smul.addr %s163, 8
          %s165 = scalar_lea.vmem %s1, %s164
        $region24: #{series_decomp_forward.1} parent=19 // pred_fallthru
          _
      $region20: #{series_decomp_forward.1} parent=5 // pred_fallthru
        _
      %p166 = scmp.le.s32.totalorder 1, %s16
      %p167 = scmp.lt.s32.totalorder %s16, 3
      %p168 = pnand %p166, %p167
      %p169 = pneg %p168
      // Predicated region
      $region25: #{series_decomp_forward.1} parent=5 // pred_check
        _
      $region26: #{series_decomp_forward.1} parent=5 // pred_check_branch
        %171 = sbr.rel (%p168) target = $region28
      $region27: #{series_decomp_forward.1} parent=5 // pred_region
        %s172 = ssub.s32 %s16, 1
        %p173 = pneg %p49
        %p174 = pneg %p46
        %p175 = scmp.lt.s32.totalorder %s25, 1
        %s176 = scalar_select %p175, %s25, 1
        %p177 = scmp.lt.s32.totalorder %s26, 0
        %s178 = scalar_select %p177, %s26, 0
        %s179 = smul.addr %s176, 2
        %s180 = sadd.s32 %s178, %s179
        %s181 = smul.addr %s180, 8
        %s182 = scalar_lea.vmem %s1, %s181
        %p183 = pneg %p77
        %p184 = pneg %p74
        %p185 = pneg %p105
        %p186 = pneg %p102
        %s187 = sand.u32 %s92, 1
        %s188 = scalar_lea.sflag [#allocation3], %s187
        %s189 = sand.u32 %s92, 1
        %s190 = smul.addr %s189, 16
        %s191 = scalar_lea.vmem [#allocation2], %s190
        %p192 = pneg %p133
        %p193 = pneg %p130
        %s194 = sand.u32 %s120, 1
        %s195 = scalar_lea.sflag [#allocation5], %s194
        %s196 = sand.u32 %s120, 1
        %s197 = smul.addr %s196, 16
        %s198 = scalar_lea.vmem [#allocation4], %s197
        %p199 = scmp.lt.s32.totalorder %s25, 1
        %s200 = scalar_select %p199, %s25, 1
        %p201 = scmp.lt.s32.totalorder %s26, 0
        %s202 = scalar_select %p201, %s26, 0
        %s203 = smul.addr %s200, 2
        %s204 = sadd.s32 %s202, %s203
        %s205 = smul.addr %s204, 8
        %s206 = scalar_lea.vmem %s1, %s205
        %v207 = vld [vmem:[%s0] sm:$0xff]
        %v208 = vld [vmem:[%s0 + $0x8] sm:$0xff]
        %v209 = vld [vmem:[%s206] sm:$0xff]
        %v210 = vld [vmem:[%s206 + $0x8] sm:$0xff]
        %vm211 = vcmask 130048
        %v213 = vsel %vm211, %v207, 0
        %v216 = vsel %vm211, %v208, 0
        %218 = vmatprep.subr.mxu0 0.0
        %219 = vmatpush1.msra.mxu0 %v209
        %220 = vmatprep.subr.mxu0 0.0
        %221 = vmatpush1.msra.mxu0 %v210
        %222 = vmatprep.subr.mxu0 0.0
        %223 = vmatpush1.msra.mxu0 0.0
        %224 = vmatprep.subr.mxu0 0.0
        %225 = vmatpush1.msra.mxu0 0.0
        %226 = vmatprep.subr.mxu0 0.0
        %227 = vmatpush1.msra.mxu0 0.0
        %228 = vmatprep.subr.mxu0 0.0
        %229 = vmatpush1.msra.mxu0 0.0
        %230 = vmatprep.subr.mxu0 0.0
        %231 = vmatpush1.msra.mxu0 0.0
        %232 = vmatprep.subr.mxu0 0.0
        %233 = vmatpush1.msra.mxu0 0.0
        %234 = vmatprep.subr.mxu0 0.0
        %235 = vmatpush1.msra.mxu0 0.0
        %236 = vmatprep.subr.mxu0 0.0
        %237 = vmatpush1.msra.mxu0 0.0
        %238 = vmatprep.subr.mxu0 0.0
        %239 = vmatpush1.msra.mxu0 0.0
        %240 = vmatprep.subr.mxu0 0.0
        %241 = vmatpush1.msra.mxu0 0.0
        %242 = vmatprep.subr.mxu0 0.0
        %243 = vmatpush1.msra.mxu0 0.0
        %244 = vmatprep.subr.mxu0 0.0
        %245 = vmatpush1.msra.mxu0 0.0
        %246 = vmatprep.subr.mxu0 0.0
        %247 = vmatpush1.msra.mxu0 0.0
        %248 = vmatprep.subr.mxu0 0.0
        %249 = vmatpush1.msra.mxu0 0.0
        %250 = vmatprep.subr.mxu0 0.0
        %251 = vmatpush1.msra.mxu0 0.0
        %252 = vmatprep.subr.mxu0 0.0
        %253 = vmatpush1.msra.mxu0 0.0
        %254 = vmatprep.subr.mxu0 0.0
        %255 = vmatpush1.msra.mxu0 0.0
        %256 = vmatprep.subr.mxu0 0.0
        %257 = vmatpush1.msra.mxu0 0.0
        %258 = vmatprep.subr.mxu0 0.0
        %259 = vmatpush1.msra.mxu0 0.0
        %260 = vmatprep.subr.mxu0 0.0
        %261 = vmatpush1.msra.mxu0 0.0
        %262 = vmatprep.subr.mxu0 0.0
        %263 = vmatpush1.msra.mxu0 0.0
        %264 = vmatprep.subr.mxu0 0.0
        %265 = vmatpush1.msra.mxu0 0.0
        %266 = vmatprep.subr.mxu0 0.0
        %267 = vmatpush1.msra.mxu0 0.0
        %268 = vmatprep.subr.mxu0 0.0
        %269 = vmatpush1.msra.mxu0 0.0
        %270 = vmatprep.subr.mxu0 0.0
        %271 = vmatpush1.msra.mxu0 0.0
        %272 = vmatprep.subr.mxu0 0.0
        %273 = vmatpush1.msra.mxu0 0.0
        %274 = vmatprep.subr.mxu0 0.0
        %275 = vmatpush1.msra.mxu0 0.0
        %276 = vmatprep.subr.mxu0 0.0
        %277 = vmatpush1.msra.mxu0 0.0
        %278 = vmatprep.subr.mxu0 0.0
        %279 = vmatpush1.msra.mxu0 0.0
        %280 = vmatprep.subr.mxu0 0.0
        %281 = vmatpush1.msra.mxu0 0.0
        %282 = vmatprep.mubr.f32.mxu0 0.0
        %283 = vmatmul.mubr.f32.gmra.mrb[0].mxu0 %v213
        %v284 = vpop.f32.mrb[0].mxu0
        %v285 = vadd.f32 0.0, %v284
        %v286 = vpop.f32.mrb[0].mxu0
        %287 = vmatprep.mubr.f32.mxu0 0.0
        %288 = vmatmul.mubr.f32.gmra.mrb[0].mxu0 %v216
        %v289 = vpop.f32.mrb[0].mxu0
        %v290 = vadd.f32 0.0, %v289
        %v291 = vpop.f32.mrb[0].mxu0
        %292 = vdwg.mxu0
        %293 = vst [vmem:[%s198] sm:$0xff] %v285
        %294 = vst [vmem:[%s198 + $0x8] sm:$0xff] %v290
        %v295 = vsub.f32 %v209, %v285
        %v296 = vsub.f32 %v210, %v290
        %297 = vst [vmem:[%s191] sm:$0xff] %v295
        %298 = vst [vmem:[%s191 + $0x8] sm:$0xff] %v296
        %s299 = sand.u32 %s92, 1
        %s300 = scalar_lea.sflag [#allocation3], %s299
        %s301 = sand.u32 %s92, 1
        %s302 = smul.addr %s301, 16
        %s303 = scalar_lea.vmem [#allocation2], %s302
        %s304 = sand.u32 %s120, 1
        %s305 = scalar_lea.sflag [#allocation5], %s304
        %s306 = sand.u32 %s120, 1
        %s307 = smul.addr %s306, 16
        %s308 = scalar_lea.vmem [#allocation4], %s307
        // Predicated region
        $region29: #{series_decomp_forward.1} parent=27 // pred_check
          %p309 = pneg %p102
        $region30: #{series_decomp_forward.1} parent=27 // pred_check_branch
          %311 = sbr.rel (%p309) target = $region32
        $region31: #{series_decomp_forward.1} parent=27 // pred_region
          %s313 = ssub.s32 256, 256
          %314 = vsyncadd %s300, %s313
          %s315 = smul.addr %s25, 2
          %s316 = sadd.s32 %s26, %s315
          %s317 = smul.addr %s316, 128
          %s318 = scalar_lea.hbm %s2, %s317
          %s319 = sshll.u32 %s303, 4
          %s320 = int_to_ptr.vmem [resolvable:$true] %s319
          %325 = dma.vmem_to_hbm [thread:$0]  %s320, 256, %s318, %s300, 128, 128, 8
        $region32: #{series_decomp_forward.1} parent=27 // pred_fallthru
          _
        // Predicated region
        $region33: #{series_decomp_forward.1} parent=27 // pred_check
          %p326 = pneg %p130
        $region34: #{series_decomp_forward.1} parent=27 // pred_check_branch
          %328 = sbr.rel (%p326) target = $region36
        $region35: #{series_decomp_forward.1} parent=27 // pred_region
          %s330 = ssub.s32 256, 256
          %331 = vsyncadd %s305, %s330
          %s332 = smul.addr %s25, 2
          %s333 = sadd.s32 %s26, %s332
          %s334 = smul.addr %s333, 128
          %s335 = scalar_lea.hbm %s3, %s334
          %s336 = sshll.u32 %s308, 4
          %s337 = int_to_ptr.vmem [resolvable:$true] %s336
          %342 = dma.vmem_to_hbm [thread:$0]  %s337, 256, %s335, %s305, 128, 128, 8
        $region36: #{series_decomp_forward.1} parent=27 // pred_fallthru
          _
      $region28: #{series_decomp_forward.1} parent=5 // pred_fallthru
        _
      %p343 = scmp.le.s32.totalorder 2, %s16
      // Predicated region
      $region37: #{series_decomp_forward.1} parent=5 // pred_check
        %p344 = pneg %p343
      $region38: #{series_decomp_forward.1} parent=5 // pred_check_branch
        %346 = sbr.rel (%p344) target = $region40
      $region39: #{series_decomp_forward.1} parent=5 // pred_region
        %s347 = ssub.s32 %s16, 2
        // Predicated region
        $region41: #{series_decomp_forward.1} parent=39 // pred_check
          %p348 = pneg %p108
        $region42: #{series_decomp_forward.1} parent=39 // pred_check_branch
          %350 = sbr.rel (%p348) target = $region44
        $region43: #{series_decomp_forward.1} parent=39 // pred_region
          %s351 = sand.u32 %s93, 1
          %s352 = scalar_lea.sflag [#allocation3], %s351
          %s353 = sand.u32 %s93, 1
          %s354 = smul.addr %s353, 16
          %s355 = scalar_lea.vmem [#allocation2], %s354
          %356 = dma.done %s352, 256
        $region44: #{series_decomp_forward.1} parent=39 // pred_fallthru
          _
        // Predicated region
        $region45: #{series_decomp_forward.1} parent=39 // pred_check
          %p357 = pneg %p136
        $region46: #{series_decomp_forward.1} parent=39 // pred_check_branch
          %359 = sbr.rel (%p357) target = $region48
        $region47: #{series_decomp_forward.1} parent=39 // pred_region
          %s360 = sand.u32 %s121, 1
          %s361 = scalar_lea.sflag [#allocation5], %s360
          %s362 = sand.u32 %s121, 1
          %s363 = smul.addr %s362, 16
          %s364 = scalar_lea.vmem [#allocation4], %s363
          %365 = dma.done %s361, 256
        $region48: #{series_decomp_forward.1} parent=39 // pred_fallthru
          _
      $region40: #{series_decomp_forward.1} parent=5 // pred_fallthru
        _
    $region6: #{series_decomp_forward.1} parent=1 // loop_footer
      %s20 = sadd.s32 1, %s16
    $region7: #{series_decomp_forward.1} parent=1 // loop_footer_branch
      %15 = sbr.rel target = $region3
    $region8: #{series_decomp_forward.1} parent=1 // loop_exit
      _
    %366 = vsyncpa [#allocation3], 1
    %s367 = scalar_lea.sflag [#allocation3], 1
    %368 = vsyncpa %s367, 1
    %369 = vsyncpa [#allocation5], 1
    %s370 = scalar_lea.sflag [#allocation5], 1
    %371 = vsyncpa %s370, 1

</llo_original>
